<compile_context>
chip_gen: v7x
topology: tpu7x:2x2x1
jax: 0.10.0
libtpu: 0.0.40
codegen_flags: <defaults>
</compile_context>

<pallas_src>
import functools

import jax
import jax.numpy as jnp
from jax.experimental import pallas as pl
from jax.experimental.pallas import tpu as pltpu

# TODO(synk): tokens.TokenCls.COO.value is not available in this sandbox;
# using 2 as a deterministic placeholder.
COO_VALUE = 2


def _round_up(x: int, m: int) -> int:
    return (x + m - 1) // m * m


def _sublane_rows(itemsize: int) -> int:
    # Native VMEM sublane packing: f32 -> 8 rows, bf16 -> 16, int8/fp8 -> 32.
    return max(8, 32 // max(itemsize, 1))


def _is_v7x() -> bool:
    try:
        kind = jax.devices()[0].device_kind.lower()
    except Exception:
        return False
    return "v7" in kind


def _vmem_budget_and_limit() -> tuple:
    """(tile byte budget, vmem_limit_bytes) derived from this chip's VMEM."""
    try:
        cap = int(pltpu.get_tpu_info().vmem_capacity_bytes)
    except Exception:
        cap = 64 * 1024 * 1024            # conservative: assume v7x-sized VMEM
    if cap <= 64 * 1024 * 1024:           # v7x: 64 MiB per TensorCore
        return 24 * 1024 * 1024, 32 * 1024 * 1024
    return 40 * 1024 * 1024, 64 * 1024 * 1024   # v5e / v6e: 128 MiB


def _pick_tile_rows(b: int, nf: int, dtype, vmem_budget: int,
                    target_block_bytes: int = 4 * 1024 * 1024) -> int:
    """Tile-row count sized by bytes with lane-padded, dtype-aware accounting."""
    itemsize = jnp.dtype(dtype).itemsize
    sublane = _sublane_rows(itemsize)
    nf_lanes = _round_up(nf, 128)
    # Per tile row: pred + target input blocks x 2 pipeline buffers (native
    # dtype, lane-padded) + the f32 [TB, 1] output block (lane-padded to 128),
    # double-buffered.
    bytes_per_row = 2 * 2 * nf_lanes * itemsize + 2 * 128 * 4
    tb_budget = vmem_budget // bytes_per_row
    tb_target = target_block_bytes // (nf_lanes * itemsize)   # ~MiB-scale blocks
    tb = max(sublane, (min(tb_budget, tb_target) // sublane) * sublane)
    if tb >= b:
        return b     # one block covering the full batch dim (always a legal block)
    return tb        # multiple of the sublane granularity; ragged tail is fine


def _coord_loss_kernel(pred_ref, tgt_ref, rowsum_ref, *, valid_rows, tile_rows):
    # pred_ref / tgt_ref : [TB, NF] native dtype
    # rowsum_ref         : [TB, 1]  f32  (per-row sum of |pred - target|)
    diff = jnp.abs(pred_ref[...].astype(jnp.float32)
                   - tgt_ref[...].astype(jnp.float32))            # VPU
    row_sums = jnp.sum(diff, axis=-1, keepdims=True)              # XLU lane reduce
    # Static ragged-tail guard: rows past the true batch hold stale VMEM
    # (possibly NaN), so SELECT them away (a multiply would keep NaN).
    rows = (pl.program_id(0) * tile_rows
            + jax.lax.broadcasted_iota(jnp.int32, (tile_rows, 1), 0))
    rowsum_ref[...] = jnp.where(rows < valid_rows, row_sums, 0.0)


def coord_loss(pred, target, target_cls, *, tile_rows=None, core_parallel=None):
    """Pallas equivalent of CoordLoss.forward.

    pred, target: [B, N, 2] float; target_cls: [B] int -> f32 scalar.
    An empty COO mask yields NaN (0/0), matching torch.mean over an empty
    selection.
    """
    B, N, C = pred.shape
    NF = N * C
    pred2 = pred.reshape(B, NF)          # contiguous reshape, no HBM copy
    tgt2 = target.reshape(B, NF)
    itemsize = jnp.dtype(pred.dtype).itemsize

    vmem_budget, vmem_limit = _vmem_budget_and_limit()
    if tile_rows is None:
        TB = _pick_tile_rows(B, NF, pred.dtype, vmem_budget)
    else:
        TB = min(int(tile_rows), B)
        if TB < B:
            sub = _sublane_rows(itemsize)
            assert TB % sub == 0, (
                f"tile_rows must be a multiple of {sub} for dtype {pred.dtype}")

    G = pl.cdiv(B, TB)

    if core_parallel is None:
        core_parallel = _is_v7x()
    batch_sem = (pltpu.CORE_PARALLEL
                 if (core_parallel and G >= 2) else pltpu.PARALLEL)

    kernel = functools.partial(_coord_loss_kernel, valid_rows=B, tile_rows=TB)

    row_sums = pl.pallas_call(
        kernel,
        out_shape=jax.ShapeDtypeStruct((B, 1), jnp.float32),
        grid=(G,),
        in_specs=[
            pl.BlockSpec((TB, NF), lambda i: (i, 0)),   # pred tile
            pl.BlockSpec((TB, NF), lambda i: (i, 0)),   # target tile
        ],
        out_specs=pl.BlockSpec((TB, 1), lambda i: (i, 0)),
        compiler_params=pltpu.CompilerParams(
            dimension_semantics=(batch_sem,),
            vmem_limit_bytes=vmem_limit,
        ),
        cost_estimate=pl.CostEstimate(
            flops=3 * B * NF,
            transcendentals=0,
            bytes_accessed=2 * B * NF * itemsize + 4 * B,
        ),
    )(pred2, tgt2)

    # O(B) epilogue in plain JAX: apply the COO mask and take the mean.
    mask = (target_cls.astype(jnp.int32) == COO_VALUE).astype(jnp.float32)  # [B]
    total = jnp.sum(row_sums[:, 0] * mask)
    count = jnp.sum(mask) * jnp.float32(NF)
    return total / count


def coord_loss_ref(pred, target, target_cls):
    mask = (target_cls.astype(jnp.int32) == COO_VALUE)
    diff = jnp.abs(pred.astype(jnp.float32) - target.astype(jnp.float32))
    m = mask.astype(jnp.float32)[:, None, None]
    total = jnp.sum(diff * m)
    count = jnp.sum(m) * diff.shape[1] * diff.shape[2]
    return total / count


if __name__ == "__main__":
    key = jax.random.PRNGKey(0)

    # Test 1: tiny batch, NF < 128 (partial-lane tiles), one full-dim block.
    B, N = 2, 8
    k1, k2 = jax.random.split(key)
    pred = jax.random.normal(k1, (B, N, 2), dtype=jnp.float32)
    target = jax.random.normal(k2, (B, N, 2), dtype=jnp.float32)
    target_cls = jnp.array([COO_VALUE, 0], dtype=jnp.int32)   # row 0 is COO

    loss = jax.block_until_ready(coord_loss(pred, target, target_cls))
    ref = coord_loss_ref(pred, target, target_cls)
    assert jnp.allclose(loss, ref, rtol=1e-5, atol=1e-6), (loss, ref)

    # Test 2: awkward batch (B=37, not a multiple of 8), auto tile size
    # (no padding copies; one full-batch block).
    B2, N2 = 37, 64
    k3, k4, k5 = jax.random.split(key, 3)
    pred2 = jax.random.normal(k3, (B2, N2, 2), dtype=jnp.float32)
    target2 = jax.random.normal(k4, (B2, N2, 2), dtype=jnp.float32)
    target_cls2 = jax.random.randint(k5, (B2,), 0, 4).astype(jnp.int32)
    target_cls2 = target_cls2.at[0].set(COO_VALUE)   # ensure a non-empty mask
    ref2 = coord_loss_ref(pred2, target2, target_cls2)

    loss2a = jax.block_until_ready(coord_loss(pred2, target2, target_cls2))
    assert jnp.allclose(loss2a, ref2, rtol=1e-5, atol=1e-6), (loss2a, ref2)

    # Test 3: force multiple grid steps with a ragged tail block
    # (37 rows, 16-row tiles -> 3 blocks, last one has 5 valid rows).
    loss2b = jax.block_until_ready(
        coord_loss(pred2, target2, target_cls2, tile_rows=16))
    assert jnp.allclose(loss2b, ref2, rtol=1e-5, atol=1e-6), (loss2b, ref2)

    print("KERNEL_OK")
</pallas_src>

<mosaic_0001>
module attributes {stable_mosaic.version = 11 : i64} {
  func.func @_coord_loss_kernel(%arg0: i32, %arg1: memref<2x16xf32, #tpu.memory_space<vmem>>, %arg2: memref<2x16xf32, #tpu.memory_space<vmem>>, %arg3: memref<2x1xf32, #tpu.memory_space<vmem>>) attributes {dimension_semantics = [#tpu.dimension_semantics<parallel>], iteration_bounds = array<i64: 1>, scalar_prefetch = 0 : i64, scratch_operands = 0 : i64, tpu.core_type = #tpu.core_type<tc>, window_params = [{transform_indices = @transform_0, window_bounds = array<i64: 2, 16>}, {transform_indices = @transform_1, window_bounds = array<i64: 2, 16>}, {transform_indices = @transform_2, window_bounds = array<i64: 2, 1>}]} {
    %c0 = arith.constant 0 : index
    %c0_0 = arith.constant 0 : index
    %0 = vector.load %arg1[%c0, %c0_0] : memref<2x16xf32, #tpu.memory_space<vmem>>, vector<2x16xf32>
    %c0_1 = arith.constant 0 : index
    %c0_2 = arith.constant 0 : index
    %1 = vector.load %arg2[%c0_1, %c0_2] : memref<2x16xf32, #tpu.memory_space<vmem>>, vector<2x16xf32>
    %2 = arith.subf %0, %1 : vector<2x16xf32>
    %3 = math.absf %2 : vector<2x16xf32>
    %cst = arith.constant dense<0.000000e+00> : vector<2xf32>
    %4 = vector.multi_reduction <add>, %3, %cst [1] : vector<2x16xf32> to vector<2xf32>
    %5 = vector.shape_cast %4 : vector<2xf32> to vector<2x1xf32>
    %c2_i32 = arith.constant 2 : i32
    %6 = arith.muli %arg0, %c2_i32 : i32
    %7 = tpu.iota {dimensions = array<i32: 0>} : vector<2x1xi32>
    %8 = vector.broadcast %6 : i32 to vector<2x1xi32>
    %9 = arith.addi %8, %7 : vector<2x1xi32>
    %c2_i32_3 = arith.constant 2 : i32
    %10 = vector.broadcast %c2_i32_3 : i32 to vector<2x1xi32>
    %11 = arith.cmpi slt, %9, %10 : vector<2x1xi32>
    %cst_4 = arith.constant 0.000000e+00 : f32
    %12 = vector.broadcast %cst_4 : f32 to vector<2x1xf32>
    %13 = arith.select %11, %5, %12 : vector<2x1xi1>, vector<2x1xf32>
    %c0_5 = arith.constant 0 : index
    %c0_6 = arith.constant 0 : index
    %14 = vector.load %arg3[%c0_5, %c0_6] : memref<2x1xf32, #tpu.memory_space<vmem>>, vector<2x1xf32>
    tpu.vector_store %arg3[%c0_5, %c0_6], %13 {strides = array<i32>} : memref<2x1xf32, #tpu.memory_space<vmem>>, vector<2x1xf32>,
    return
  }
  func.func @transform_0(%arg0: i32) -> (i32, i32) {
    %c0_i32 = arith.constant 0 : i32
    %c0_i32_0 = arith.constant 0 : i32
    return %arg0, %c0_i32 : i32, i32
  }
  func.func @transform_1(%arg0: i32) -> (i32, i32) {
    %c0_i32 = arith.constant 0 : i32
    %c0_i32_0 = arith.constant 0 : i32
    return %arg0, %c0_i32 : i32, i32
  }
  func.func @transform_2(%arg0: i32) -> (i32, i32) {
    %c0_i32 = arith.constant 0 : i32
    %c0_i32_0 = arith.constant 0 : i32
    return %arg0, %c0_i32 : i32, i32
  }
}

</mosaic_0001>

<llo_original>
// kernel: tpu_custom_call.1
$region0: #{tpu_custom_call.1}
  #allocation0 [shape = 'u32[]', space=smem, size = 0x4, offset = 0x4, fixed_abs, tag = 'smem constant byte address 0x4 - core index']
  #allocation1 [shape = 'u32[144,128]{1,0:T(1,128)}', space=vmem, size = 0x12000, scoped, tag = 'internal scratch']
  %s0 = inlined_call_operand.hbm [shape: f32[2,16], index: 0, kind: input, shape index: {}]
  %s1 = inlined_call_operand.vmem [shape: f32[2,16], index: 1, kind: input, shape index: {}]
  %s2 = inlined_call_operand.vmem [shape: f32[2,1], index: 2, kind: output, shape index: {}]
  %s3 = sld [smem:[#allocation0]]
  $region22: #{tpu_custom_call.1} parent=0
    _
  %s5 = ssub.s32 1, %s3
  %s6 = scalar_select 0, %s5, %s3
  $region1: #{tpu_custom_call.1} parent=0
    #allocation2 [shape = 'u8[1024]{0}', space=vmem, size = 0x400, scoped, tag = 'input window, operand 0, single buffered']
    #allocation3 [shape = 's32[1]{0}', space=sflag, size = 0x4, scoped, tag = 'scoped memory for tpu_custom_call.1']
    %7 = vsyncpa [#allocation3], 0
    // Predicated region
    $region2: #{tpu_custom_call.1} parent=1 // pred_check
      _
    $region3: #{tpu_custom_call.1} parent=1 // pred_check_branch
      %9 = sbr.rel (0) target = $region5
    $region4: #{tpu_custom_call.1} parent=1 // pred_region
      %s11 = ssub.s32 32, 32
      %12 = vsyncadd [#allocation3], %s11
      %s14 = sshll.u32 [#allocation2], 4
      %s15 = int_to_ptr.vmem [resolvable:$true] %s14
      %17 = dma.hbm_to_vmem [thread:$0]  %s0, 32, %s15, [#allocation3]
    $region5: #{tpu_custom_call.1} parent=1 // pred_fallthru
      _
    // Predicated region
    $region6: #{tpu_custom_call.1} parent=1 // pred_check
      _
    $region7: #{tpu_custom_call.1} parent=1 // pred_check_branch
      %19 = sbr.rel (0) target = $region9
    $region8: #{tpu_custom_call.1} parent=1 // pred_region
      _
    $region9: #{tpu_custom_call.1} parent=1 // pred_fallthru
      _
    // Predicated region
    $region10: #{tpu_custom_call.1} parent=1 // pred_check
      _
    $region11: #{tpu_custom_call.1} parent=1 // pred_check_branch
      %21 = sbr.rel (0) target = $region13
    $region12: #{tpu_custom_call.1} parent=1 // pred_region
      %22 = dma.done [#allocation3], 32
    $region13: #{tpu_custom_call.1} parent=1 // pred_fallthru
      _
    %v23 = vld [vmem:[#allocation2] sm:$0x3]
    %v24 = vld [vmem:[%s1] sm:$0x3]
    %v25 = vsub.f32 %v23, %v24
    %v26 = vand.u32 2147483647, %v25
    %vm27 = vcmask 123904
    %v28 = vsel %vm27, %v26, 0.0
    %29 = vadd.xlane.f32.xlu0 %v28
    %v30 = vpop.xlane.xlu0 %29
    %s31 = smul.u32 0, 2
    %v32 = vlaneseq
    %v33 = vshrl.u32 %v32, 7
    %v34 = vstv %s31
    %v35 = vadd.s32 %v34, %v33
    %vm36 = vcmp.lt.s32.totalorder %v35, 2
    %v37 = vsel %vm36, %v30, 0.0
    %vm38 = vcmask 1024
    %39 = vst.msk [vmem:[%s2] sm:$0x3] %vm38, %v37
    // Predicated region
    $region14: #{tpu_custom_call.1} parent=1 // pred_check
      _
    $region15: #{tpu_custom_call.1} parent=1 // pred_check_branch
      %41 = sbr.rel (0) target = $region17
    $region16: #{tpu_custom_call.1} parent=1 // pred_region
      _
    $region17: #{tpu_custom_call.1} parent=1 // pred_fallthru
      _
    // Predicated region
    $region18: #{tpu_custom_call.1} parent=1 // pred_check
      _
    $region19: #{tpu_custom_call.1} parent=1 // pred_check_branch
      %43 = sbr.rel (0) target = $region21
    $region20: #{tpu_custom_call.1} parent=1 // pred_region
      _
    $region21: #{tpu_custom_call.1} parent=1 // pred_fallthru
      _
    %44 = vsyncpa [#allocation3], 1

</llo_original>
